<compile_context>
chip_gen: v5e
topology: v5e:2x2
jax: 0.10.0
libtpu: 0.0.40
codegen_flags: <defaults>
</compile_context>

<pallas_src>
import math
from functools import partial

import jax
import jax.numpy as jnp
from jax import lax
from jax.experimental import pallas as pl
from jax.experimental.pallas import tpu as pltpu


def _round_up(x, m):
    return (x + m - 1) // m * m


def _make_divisible(v, divisor, min_value=None):
    if min_value is None:
        min_value = divisor
    new_v = max(min_value, int(v + divisor / 2) // divisor * divisor)
    if new_v < 0.9 * v:
        new_v += divisor
    return new_v


def _cparams():
    return pltpu.CompilerParams(
        dimension_semantics=("parallel",),
        vmem_limit_bytes=32 * 1024 * 1024,
    )


# ----------------------------- Pallas kernels -----------------------------

def _apply_act(y, act):
    if act == "relu6":
        return jnp.clip(y, 0.0, 6.0)
    if act == "hswish":                      # x * relu6(x + 3) / 6
        return y * jnp.clip(y + 3.0, 0.0, 6.0) * (1.0 / 6.0)
    if act == "sigmoid":
        return jax.nn.sigmoid(y)
    return y


def _mm_kernel(x_ref, w_ref, s_ref, b_ref, o_ref, *, act):
    # fused (1x1 conv / 3x3 stem conv as matmul) + folded BatchNorm affine + activation
    y = jnp.dot(x_ref[...], w_ref[...], preferred_element_type=jnp.float32)
    y = y * s_ref[...] + b_ref[...]
    o_ref[...] = _apply_act(y, act).astype(o_ref.dtype)


def _dw_kernel(*refs, n_phases, taps, ho, wo, with_pool):
    # depthwise 3x3 conv: 9 unrolled FMAs on (Ho, Wo, C) tiles formed by static slices
    # of the padded (phase-decomposed) image; fused BN + ReLU6; optional CoordAtt
    # H/W mean-pooling fused into the epilogue.
    ph = refs[:n_phases]
    w_ref = refs[n_phases]
    s_ref = refs[n_phases + 1]
    b_ref = refs[n_phases + 2]
    o_ref = refs[n_phases + 3]
    wv = w_ref[...]                                    # (9, 1, 1, C)
    acc = None
    for k, (pi, r0, c0) in enumerate(taps):
        t = ph[pi][0, r0:r0 + ho, c0:c0 + wo, :].astype(jnp.float32)
        term = t * wv[k]
        acc = term if acc is None else acc + term
    y = jnp.clip(acc * s_ref[...] + b_ref[...], 0.0, 6.0)
    o_ref[0] = y.astype(o_ref.dtype)
    if with_pool:
        xh_ref = refs[n_phases + 4]
        xw_ref = refs[n_phases + 5]
        xh_ref[0] = jnp.mean(y, axis=1)                # mean over W  -> (Ho, C)
        xw_ref[0] = jnp.mean(y, axis=0)                # mean over H  -> (Wo, C)


def _ca_gate_kernel(xh_ref, xw_ref, w1_ref, s1_ref, b1_ref,
                    w2_ref, b2_ref, w3_ref, b3_ref, ah_ref, aw_ref):
    # whole CoordAtt gate branch: conv1 + BN + h-swish, then conv2/conv3 + sigmoid.
    # BN/1x1 convs act per-position, so applying them to the H- and W-pooled vectors
    # separately is identical to applying them to the concatenated tensor.
    w1 = w1_ref[...]

    def branch(x, w23_ref, b_ref):
        y = jnp.dot(x.astype(jnp.bfloat16), w1, preferred_element_type=jnp.float32)
        y = y * s1_ref[...] + b1_ref[...]
        y = _apply_act(y, "hswish")
        g = jnp.dot(y.astype(jnp.bfloat16), w23_ref[...],
                    preferred_element_type=jnp.float32) + b_ref[...]
        return jax.nn.sigmoid(g)

    ah_ref[0] = branch(xh_ref[0], w2_ref, b2_ref)
    aw_ref[0] = branch(xw_ref[0], w3_ref, b3_ref)


def _proj_ca_kernel(x_ref, ah_ref, aw_ref, w_ref, s_ref, b_ref, *rest, ho, has_res):
    # CoordAtt gating fused with the 1x1 projection conv + folded BN (+ residual add).
    if has_res:
        r_ref, o_ref = rest
    else:
        (o_ref,) = rest
    w = w_ref[...]
    aw = aw_ref[0]                                       # (Wo, C) f32
    for h in range(ho):                                  # static unroll, Ho <= 8 here
        xm = x_ref[0, h].astype(jnp.float32) * aw * ah_ref[0, h:h + 1]
        y = jnp.dot(xm.astype(jnp.bfloat16), w, preferred_element_type=jnp.float32)
        y = y * s_ref[...] + b_ref[...]
        if has_res:
            y = y + r_ref[0, h].astype(jnp.float32)
        o_ref[0, h] = y.astype(o_ref.dtype)


def _head_kernel(x_ref, wh_ref, sh_ref, bh_ref, wc_ref, bc_ref, o_ref):
    # head 1x1 conv + BN + ReLU6, global average pool, classifier linear, all fused.
    x = x_ref[0].astype(jnp.bfloat16)                    # (HW, C)
    y = jnp.dot(x, wh_ref[...], preferred_element_type=jnp.float32)
    y = jnp.clip(y * sh_ref[...] + bh_ref[...], 0.0, 6.0)
    pooled = jnp.mean(y, axis=0, keepdims=True)          # (1, head_ch)
    logits = jnp.dot(pooled.astype(jnp.bfloat16), wc_ref[...],
                     preferred_element_type=jnp.float32) + bc_ref[...]
    o_ref[...] = logits.astype(o_ref.dtype)


# ----------------------------- kernel wrappers -----------------------------

@partial(jax.jit, static_argnames=("act", "tm"))
def matmul_bn_act(x, w, scale, bias, *, act="none", tm=256):
    # x: (M, K), w: (K, N) bf16, scale/bias: (N,) f32. Gridded over M-row tiles.
    M, K = x.shape
    N = w.shape[1]
    x = x.astype(jnp.bfloat16)
    TM = tm if M > tm else max(_round_up(M, 16), 16)
    Mp = _round_up(M, TM)
    if Mp != M:
        x = jnp.pad(x, ((0, Mp - M), (0, 0)))
    out = pl.pallas_call(
        partial(_mm_kernel, act=act),
        out_shape=jax.ShapeDtypeStruct((Mp, N), jnp.bfloat16),
        grid=(Mp // TM,),
        in_specs=[
            pl.BlockSpec((TM, K), lambda i: (i, 0)),
            pl.BlockSpec((K, N), lambda i: (0, 0)),
            pl.BlockSpec((1, N), lambda i: (0, 0)),
            pl.BlockSpec((1, N), lambda i: (0, 0)),
        ],
        out_specs=pl.BlockSpec((TM, N), lambda i: (i, 0)),
        compiler_params=_cparams(),
    )(x, w, scale.reshape(1, N), bias.reshape(1, N))
    return out[:M] if Mp != M else out


@partial(jax.jit, static_argnames=("stride", "with_pool"))
def depthwise3x3_bn_relu6(x, w, scale, bias, *, stride, with_pool):
    # x: (N, H, W, C) bf16 ; w: (9, C) f32 taps row-major (kh, kw).
    # No im2col: the padded image (stride 1) or its 4 even/odd phases (stride 2) are
    # streamed per batch element; the 9 taps are static in-kernel slices.
    N, H, W, C = x.shape
    Ho = (H - 1) // stride + 1
    Wo = (W - 1) // stride + 1
    xp = jnp.pad(x, ((0, 0), (1, 1), (1, 1), (0, 0)))
    if stride == 1:
        phases = [xp]
        taps = tuple((0, di, dj) for di in range(3) for dj in range(3))
    else:
        phases = [xp[:, rp::2, cp::2, :] for rp in (0, 1) for cp in (0, 1)]
        taps = tuple((2 * (di % 2) + (dj % 2), di // 2, dj // 2)
                     for di in range(3) for dj in range(3))
    n_ph = len(phases)

    in_specs = [pl.BlockSpec((1,) + p.shape[1:], lambda n: (n, 0, 0, 0)) for p in phases]
    in_specs += [
        pl.BlockSpec((9, 1, 1, C), lambda n: (0, 0, 0, 0)),
        pl.BlockSpec((1, 1, C), lambda n: (0, 0, 0)),
        pl.BlockSpec((1, 1, C), lambda n: (0, 0, 0)),
    ]
    out_shapes = [jax.ShapeDtypeStruct((N, Ho, Wo, C), jnp.bfloat16)]
    out_specs = [pl.BlockSpec((1, Ho, Wo, C), lambda n: (n, 0, 0, 0))]
    if with_pool:
        out_shapes += [jax.ShapeDtypeStruct((N, Ho, C), jnp.float32),
                       jax.ShapeDtypeStruct((N, Wo, C), jnp.float32)]
        out_specs += [pl.BlockSpec((1, Ho, C), lambda n: (n, 0, 0)),
                      pl.BlockSpec((1, Wo, C), lambda n: (n, 0, 0))]

    kernel = partial(_dw_kernel, n_phases=n_ph, taps=taps, ho=Ho, wo=Wo,
                     with_pool=with_pool)
    out = pl.pallas_call(
        kernel,
        grid=(N,),
        out_shape=tuple(out_shapes) if with_pool else out_shapes[0],
        in_specs=in_specs,
        out_specs=tuple(out_specs) if with_pool else out_specs[0],
        compiler_params=_cparams(),
    )(*phases, w.reshape(9, 1, 1, C),
      scale.reshape(1, 1, C), bias.reshape(1, 1, C))
    return out


@jax.jit
def ca_gates(xh, xw, w1, s1, b1, w2, b2, w3, b3):
    # xh: (N, H, C), xw: (N, W, C) pooled activations -> a_h (N, H, C), a_w (N, W, C)
    N, H, C = xh.shape
    W = xw.shape[1]
    mip = w1.shape[1]
    return pl.pallas_call(
        _ca_gate_kernel,
        grid=(N,),
        out_shape=(jax.ShapeDtypeStruct((N, H, C), jnp.float32),
                   jax.ShapeDtypeStruct((N, W, C), jnp.float32)),
        in_specs=[
            pl.BlockSpec((1, H, C), lambda n: (n, 0, 0)),
            pl.BlockSpec((1, W, C), lambda n: (n, 0, 0)),
            pl.BlockSpec((C, mip), lambda n: (0, 0)),
            pl.BlockSpec((1, mip), lambda n: (0, 0)),
            pl.BlockSpec((1, mip), lambda n: (0, 0)),
            pl.BlockSpec((mip, C), lambda n: (0, 0)),
            pl.BlockSpec((1, C), lambda n: (0, 0)),
            pl.BlockSpec((mip, C), lambda n: (0, 0)),
            pl.BlockSpec((1, C), lambda n: (0, 0)),
        ],
        out_specs=(pl.BlockSpec((1, H, C), lambda n: (n, 0, 0)),
                   pl.BlockSpec((1, W, C), lambda n: (n, 0, 0))),
        compiler_params=_cparams(),
    )(xh, xw, w1, s1.reshape(1, mip), b1.reshape(1, mip),
      w2, b2.reshape(1, C), w3, b3.reshape(1, C))


@jax.jit
def proj_ca(x, ah, aw, w, scale, bias, r=None):
    # x: (N, Ho, Wo, hidden) bf16 ; gates ah/aw f32 ; w: (hidden, oup) bf16 ;
    # optional residual r: (N, Ho, Wo, oup) bf16.
    N, Ho, Wo, C = x.shape
    oup = w.shape[1]
    has_res = r is not None
    in_specs = [
        pl.BlockSpec((1, Ho, Wo, C), lambda n: (n, 0, 0, 0)),
        pl.BlockSpec((1, Ho, C), lambda n: (n, 0, 0)),
        pl.BlockSpec((1, Wo, C), lambda n: (n, 0, 0)),
        pl.BlockSpec((C, oup), lambda n: (0, 0)),
        pl.BlockSpec((1, oup), lambda n: (0, 0)),
        pl.BlockSpec((1, oup), lambda n: (0, 0)),
    ]
    args = [x, ah, aw, w, scale.reshape(1, oup), bias.reshape(1, oup)]
    if has_res:
        in_specs.append(pl.BlockSpec((1, Ho, Wo, oup), lambda n: (n, 0, 0, 0)))
        args.append(r)
    return pl.pallas_call(
        partial(_proj_ca_kernel, ho=Ho, has_res=has_res),
        grid=(N,),
        out_shape=jax.ShapeDtypeStruct((N, Ho, Wo, oup), jnp.bfloat16),
        in_specs=in_specs,
        out_specs=pl.BlockSpec((1, Ho, Wo, oup), lambda n: (n, 0, 0, 0)),
        compiler_params=_cparams(),
    )(*args)


@jax.jit
def head_pool_classify(x, wh, sh, bh, wc, bc):
    # x: (N, HW, C) bf16 -> logits (N, num_classes) f32
    N, HW, C = x.shape
    head_ch = wh.shape[1]
    nc = wc.shape[1]
    return pl.pallas_call(
        _head_kernel,
        grid=(N,),
        out_shape=jax.ShapeDtypeStruct((N, nc), jnp.float32),
        in_specs=[
            pl.BlockSpec((1, HW, C), lambda n: (n, 0, 0)),
            pl.BlockSpec((C, head_ch), lambda n: (0, 0)),
            pl.BlockSpec((1, head_ch), lambda n: (0, 0)),
            pl.BlockSpec((1, head_ch), lambda n: (0, 0)),
            pl.BlockSpec((head_ch, nc), lambda n: (0, 0)),
            pl.BlockSpec((1, nc), lambda n: (0, 0)),
        ],
        out_specs=pl.BlockSpec((1, nc), lambda n: (n, 0)),
        compiler_params=_cparams(),
    )(x, wh, sh.reshape(1, head_ch), bh.reshape(1, head_ch), wc, bc.reshape(1, nc))


def _extract_patches_3x3(x, stride):
    # glue for the stem conv only (3 input channels -> tiny): im2col-style tap
    # extraction with padding=1; ordering (kh, kw, cin) to match the stem weight layout.
    N, H, W, C = x.shape
    Ho = (H - 1) // stride + 1
    Wo = (W - 1) // stride + 1
    xp = jnp.pad(x, ((0, 0), (1, 1), (1, 1), (0, 0)))
    taps = []
    for di in range(3):
        for dj in range(3):
            sl = lax.slice(
                xp,
                (0, di, dj, 0),
                (N, di + (Ho - 1) * stride + 1, dj + (Wo - 1) * stride + 1, C),
                (1, stride, stride, 1),
            )
            taps.append(sl)
    return jnp.concatenate(taps, axis=-1), Ho, Wo        # (N, Ho, Wo, 9*C)


# ----------------------------- parameters -----------------------------

class _KeyGen:
    def __init__(self, key):
        self._key = key

    def __call__(self):
        self._key, sub = jax.random.split(self._key)
        return sub


def _conv_weight(kg, shape, fan, dtype=jnp.bfloat16):
    # PyTorch init: normal(0, sqrt(2 / (kH*kW*out_channels)))
    return (jax.random.normal(kg(), shape, jnp.float32) * math.sqrt(2.0 / fan)).astype(dtype)


def _bn_fold(c, conv_bias=None, eps=1e-5):
    # eval-mode BatchNorm folded into (scale, bias); init: gamma=1, beta=0, mean=0, var=1
    gamma = jnp.ones((c,), jnp.float32)
    beta = jnp.zeros((c,), jnp.float32)
    mean = jnp.zeros((c,), jnp.float32)
    var = jnp.ones((c,), jnp.float32)
    scale = gamma / jnp.sqrt(var + eps)
    cb = jnp.zeros((c,), jnp.float32) if conv_bias is None else conv_bias
    bias = beta + (cb - mean) * scale
    return scale, bias


def _make_block(kg, inp, oup, stride, t):
    hidden = int(round(inp * t))
    blk = {
        "stride": stride, "expand": t, "inp": inp, "oup": oup, "hidden": hidden,
        "identity": (stride == 1 and inp == oup),
    }
    if t != 1:
        blk["exp_w"] = _conv_weight(kg, (inp, hidden), hidden)          # 1x1 expand
        blk["exp_sb"] = _bn_fold(hidden)
    blk["dw_w"] = _conv_weight(kg, (9, hidden), 9 * hidden, dtype=jnp.float32)
    blk["dw_sb"] = _bn_fold(hidden)
    if t != 1:
        mip = max(8, hidden // 32)
        blk["mip"] = mip
        blk["ca1_w"] = _conv_weight(kg, (hidden, mip), mip)
        blk["ca1_sb"] = _bn_fold(mip, conv_bias=jnp.zeros((mip,), jnp.float32))
        blk["ca2_w"] = _conv_weight(kg, (mip, hidden), hidden)
        blk["ca2_b"] = jnp.zeros((hidden,), jnp.float32)
        blk["ca3_w"] = _conv_weight(kg, (mip, hidden), hidden)
        blk["ca3_b"] = jnp.zeros((hidden,), jnp.float32)
    blk["proj_w"] = _conv_weight(kg, (hidden, oup), oup)                # 1x1 project
    blk["proj_sb"] = _bn_fold(oup)
    return blk


def build_model(key, num_classes=3, width_mult=1.0):
    cfgs = [[1, 16, 1, 1], [6, 24, 2, 2], [6, 32, 3, 2], [6, 64, 4, 2],
            [6, 96, 3, 1], [6, 160, 3, 2], [6, 320, 1, 1]]
    kg = _KeyGen(key)
    params = {}
    in_ch = _make_divisible(32 * width_mult, 4 if width_mult == 0.1 else 8)
    # stem: 3x3 conv stride 2, 3 -> in_ch ; weight stored as (kh*kw*cin, cout)
    params["stem_w"] = _conv_weight(kg, (3, 3, 3, in_ch), 9 * in_ch).reshape(27, in_ch)
    params["stem_sb"] = _bn_fold(in_ch)
    blocks = []
    input_channel = in_ch
    for t, c, n, s in cfgs:
        out_ch = _make_divisible(c * width_mult, 4 if width_mult == 0.1 else 8)
        for i in range(n):
            blocks.append(_make_block(kg, input_channel, out_ch, s if i == 0 else 1, t))
            input_channel = out_ch
    params["blocks"] = blocks
    head_ch = _make_divisible(1280 * width_mult, 8) if width_mult > 1.0 else 1280
    params["head_w"] = _conv_weight(kg, (input_channel, head_ch), head_ch)
    params["head_sb"] = _bn_fold(head_ch)
    params["cls_w"] = (jax.random.normal(kg(), (head_ch, num_classes), jnp.float32)
                       * 0.01).astype(jnp.bfloat16)
    params["cls_b"] = jnp.zeros((num_classes,), jnp.float32)
    return params


# ----------------------------- forward -----------------------------

def inverted_residual(blk, x):
    N, H, W, C = x.shape
    if blk["expand"] != 1:
        hd = blk["hidden"]
        h = matmul_bn_act(x.reshape(N * H * W, C), blk["exp_w"], *blk["exp_sb"],
                          act="relu6").reshape(N, H, W, hd)
        dw, xh, xw = depthwise3x3_bn_relu6(h, blk["dw_w"], *blk["dw_sb"],
                                           stride=blk["stride"], with_pool=True)
        ah, aw = ca_gates(xh, xw, blk["ca1_w"], *blk["ca1_sb"],
                          blk["ca2_w"], blk["ca2_b"], blk["ca3_w"], blk["ca3_b"])
        r = x if blk["identity"] else None
        out = proj_ca(dw, ah, aw, blk["proj_w"], *blk["proj_sb"], r)
    else:
        dw = depthwise3x3_bn_relu6(x, blk["dw_w"], *blk["dw_sb"],
                                   stride=blk["stride"], with_pool=False)
        Nn, Ho, Wo, Ch = dw.shape
        out = matmul_bn_act(dw.reshape(Nn * Ho * Wo, Ch), blk["proj_w"],
                            *blk["proj_sb"], act="none").reshape(Nn, Ho, Wo, blk["oup"])
        if blk["identity"]:
            out = out + x
    return out


def forward(params, x):
    # x: (N, H, W, 3) NHWC float32
    x = x.astype(jnp.bfloat16)
    N = x.shape[0]
    # stem conv 3x3 stride 2 + BN + ReLU6 (im2col glue on the 3-channel input is tiny)
    p, Ho, Wo = _extract_patches_3x3(x, 2)
    y = matmul_bn_act(p.reshape(N * Ho * Wo, 27), params["stem_w"],
                      *params["stem_sb"], act="relu6")
    h = y.reshape(N, Ho, Wo, -1)
    for blk in params["blocks"]:
        h = inverted_residual(blk, h)
    feat = h                                               # output of self.features
    Nn, Hh, Ww, C = h.shape
    logits = head_pool_classify(h.reshape(Nn, Hh * Ww, C), params["head_w"],
                                *params["head_sb"], params["cls_w"], params["cls_b"])
    # Dropout(0.1) is identity in eval mode.
    # TODO(synk): PyTorch forward returns (x, self.features) where the second item is the
    # nn.Sequential module itself; we return the feature-map activation tensor instead.
    return logits, feat


if __name__ == "__main__":
    key = jax.random.PRNGKey(0)
    pkey, xkey = jax.random.split(key)
    params = build_model(pkey, num_classes=3, width_mult=1.0)
    # PyTorch-equivalent input: (2, 3, 32, 32) NCHW ; here NHWC
    x = jax.random.normal(xkey, (2, 32, 32, 3), jnp.float32)
    logits, feat = forward(params, x)
    jax.block_until_ready(logits)
    jax.block_until_ready(feat)
    assert logits.shape == (2, 3)
    assert feat.shape == (2, 1, 1, 320)
    print("KERNEL_OK")
</pallas_src>

<mosaic_0001>
module attributes {stable_mosaic.version = 11 : i64} {
  func.func @_mm_kernel(%arg0: i32, %arg1: memref<256x27xbf16, #tpu.memory_space<vmem>>, %arg2: memref<27x32xbf16, #tpu.memory_space<vmem>>, %arg3: memref<1x32xf32, #tpu.memory_space<vmem>>, %arg4: memref<1x32xf32, #tpu.memory_space<vmem>>, %arg5: memref<256x32xbf16, #tpu.memory_space<vmem>>) attributes {dimension_semantics = [#tpu.dimension_semantics<parallel>], iteration_bounds = array<i64: 2>, scalar_prefetch = 0 : i64, scratch_operands = 0 : i64, tpu.core_type = #tpu.core_type<tc>, window_params = [{transform_indices = @transform_0, window_bounds = array<i64: 256, 27>}, {pipeline_mode = #tpu.pipeline_mode<synchronous>, transform_indices = @transform_1, window_bounds = array<i64: 27, 32>}, {pipeline_mode = #tpu.pipeline_mode<synchronous>, transform_indices = @transform_2, window_bounds = array<i64: 1, 32>}, {pipeline_mode = #tpu.pipeline_mode<synchronous>, transform_indices = @transform_3, window_bounds = array<i64: 1, 32>}, {transform_indices = @transform_4, window_bounds = array<i64: 256, 32>}]} {
    %c0 = arith.constant 0 : index
    %c0_0 = arith.constant 0 : index
    %0 = vector.load %arg1[%c0, %c0_0] : memref<256x27xbf16, #tpu.memory_space<vmem>>, vector<256x27xbf16>
    %c0_1 = arith.constant 0 : index
    %c0_2 = arith.constant 0 : index
    %1 = vector.load %arg2[%c0_1, %c0_2] : memref<27x32xbf16, #tpu.memory_space<vmem>>, vector<27x32xbf16>
    %cst = arith.constant dense<0.000000e+00> : vector<256x32xf32>
    %2 = tpu.matmul %0, %1, %cst {dimension_numbers = #tpu.dot_dimension_numbers<[1], [0], [0], [1], [0, 0, 1, 1], [], []>} : vector<256x27xbf16>, vector<27x32xbf16>, vector<256x32xf32> -> vector<256x32xf32>
    %c0_3 = arith.constant 0 : index
    %c0_4 = arith.constant 0 : index
    %3 = vector.load %arg3[%c0_3, %c0_4] : memref<1x32xf32, #tpu.memory_space<vmem>>, vector<1x32xf32>
    %4 = vector.broadcast %3 : vector<1x32xf32> to vector<256x32xf32>
    %5 = arith.mulf %2, %4 : vector<256x32xf32>
    %c0_5 = arith.constant 0 : index
    %c0_6 = arith.constant 0 : index
    %6 = vector.load %arg4[%c0_5, %c0_6] : memref<1x32xf32, #tpu.memory_space<vmem>>, vector<1x32xf32>
    %7 = vector.broadcast %6 : vector<1x32xf32> to vector<256x32xf32>
    %8 = arith.addf %5, %7 : vector<256x32xf32>
    %cst_7 = arith.constant 0.000000e+00 : f32
    %cst_8 = arith.constant 6.000000e+00 : f32
    %9 = vector.broadcast %cst_7 : f32 to vector<256x32xf32>
    %10 = arith.maximumf %9, %8 : vector<256x32xf32>
    %11 = vector.broadcast %cst_8 : f32 to vector<256x32xf32>
    %12 = arith.minimumf %11, %10 : vector<256x32xf32>
    %13 = arith.truncf %12 : vector<256x32xf32> to vector<256x32xbf16>
    %c0_9 = arith.constant 0 : index
    %c0_10 = arith.constant 0 : index
    %14 = vector.load %arg5[%c0_9, %c0_10] : memref<256x32xbf16, #tpu.memory_space<vmem>>, vector<256x32xbf16>
    tpu.vector_store %arg5[%c0_9, %c0_10], %13 {strides = array<i32>} : memref<256x32xbf16, #tpu.memory_space<vmem>>, vector<256x32xbf16>,
    return
  }
  func.func @transform_0(%arg0: i32) -> (i32, i32) {
    %c0_i32 = arith.constant 0 : i32
    %c0_i32_0 = arith.constant 0 : i32
    return %arg0, %c0_i32 : i32, i32
  }
  func.func @transform_1(%arg0: i32) -> (i32, i32) {
    %c0_i32 = arith.constant 0 : i32
    %c0_i32_0 = arith.constant 0 : i32
    %c0_i32_1 = arith.constant 0 : i32
    return %c0_i32, %c0_i32_0 : i32, i32
  }
  func.func @transform_2(%arg0: i32) -> (i32, i32) {
    %c0_i32 = arith.constant 0 : i32
    %c0_i32_0 = arith.constant 0 : i32
    %c0_i32_1 = arith.constant 0 : i32
    return %c0_i32, %c0_i32_0 : i32, i32
  }
  func.func @transform_3(%arg0: i32) -> (i32, i32) {
    %c0_i32 = arith.constant 0 : i32
    %c0_i32_0 = arith.constant 0 : i32
    %c0_i32_1 = arith.constant 0 : i32
    return %c0_i32, %c0_i32_0 : i32, i32
  }
  func.func @transform_4(%arg0: i32) -> (i32, i32) {
    %c0_i32 = arith.constant 0 : i32
    %c0_i32_0 = arith.constant 0 : i32
    return %arg0, %c0_i32 : i32, i32
  }
}

</mosaic_0001>

<llo_original>
// kernel: matmul_bn_act.1
$region0: #{matmul_bn_act.1}
  #allocation0 [shape = 'u32[]', space=smem, size = 0x4, offset = 0x4, fixed_abs, tag = 'smem constant byte address 0x4 - core index']
  #allocation1 [shape = 'u32[72,128]{1,0:T(1,128)}', space=vmem, size = 0x9000, scoped, tag = 'internal scratch']
  %s0 = inlined_call_operand.vmem [shape: bf16[512,27], index: 0, kind: input, shape index: {}]
  %s1 = inlined_call_operand.vmem [shape: bf16[27,32], index: 1, kind: input, shape index: {}]
  %s2 = inlined_call_operand.vmem [shape: f32[1,32], index: 2, kind: input, shape index: {}]
  %s3 = inlined_call_operand.vmem [shape: f32[1,32], index: 3, kind: input, shape index: {}]
  %s4 = inlined_call_operand.vmem [shape: bf16[512,32], index: 4, kind: output, shape index: {}]
  %s5 = sld [smem:[#allocation0]]
  $region49: #{matmul_bn_act.1} parent=0
    _
  %s7 = ssub.s32 1, %s5
  %s8 = scalar_select 0, %s7, %s5
  loop: start=0, step=1, limit=4
  $region2: #{matmul_bn_act.1} parent=0 // loop_pre_header
    _
  $region3: #{matmul_bn_act.1} parent=0 // loop_header
    %s10 = sphi 0, %s14
    %p11 = scmp.ge.s32.totalorder %s10, 4
    %s20 = sphi 0, %s22
    %s23 = sphi 0, %s20
    %s24 = sphi 0, %s23
    %s40 = sphi 0, %s24
    %s44 = sphi 0, %s44
    %s46 = sphi 0, %s44
    %s47 = sphi 0, %s46
    %s61 = sphi 0, %s47
    %s65 = sphi 0, %s65
    %s67 = sphi 0, %s65
    %s68 = sphi 0, %s67
    %s82 = sphi 0, %s68
    %s86 = sphi 0, %s86
    %s88 = sphi 0, %s86
    %s89 = sphi 0, %s88
    %s103 = sphi 0, %s89
    %s109 = sphi 0, %s111
    %s112 = sphi 0, %s109
    %s113 = sphi 0, %s112
    %s129 = sphi 0, %s113
  $region4: #{matmul_bn_act.1} parent=0 // loop_header_branch
    %13 = sbr.rel (%p11) target = $region8
  $region5: #{matmul_bn_act.1} parent=0 // loop_body
    %s15 = ssub.s32 %s10, 1
    %s16 = ssub.s32 %s10, 2
    %s17 = sadd.s32 %s10, 1
    %s18 = ssub.s32 %s10, %s17
    %p19 = scmp.eq.s32.totalorder %s18, 0
    %s21 = sadd.s32 %s20, 1
    %s22 = scalar_select %p19, %s20, %s21
    %p25 = pneg %p19
    %p26 = scmp.eq.s32.totalorder %s10, 1
    %p27 = por %p25, %p26
    %p28 = scmp.ne.s32.totalorder %s20, %s23
    %p29 = scmp.eq.s32.totalorder %s10, 0
    %p30 = por %p28, %p29
    %p31 = scmp.ne.s32.totalorder %s20, %s23
    %p32 = scmp.eq.s32.totalorder %s15, 1
    %p33 = por %p31, %p32
    %p34 = scmp.ne.s32.totalorder %s23, %s24
    %p35 = scmp.eq.s32.totalorder %s15, 0
    %p36 = por %p34, %p35
    %p37 = scmp.ne.s32.totalorder %s23, %s24
    %p38 = scmp.eq.s32.totalorder %s16, 1
    %p39 = por %p37, %p38
    %p41 = scmp.ne.s32.totalorder %s24, %s40
    %p42 = scmp.eq.s32.totalorder %s16, 0
    %p43 = por %p41, %p42
    %s45 = sadd.s32 %s44, 1
    %p48 = scmp.eq.s32.totalorder %s10, 1
    %p49 = scmp.ne.s32.totalorder %s44, %s46
    %p50 = scmp.eq.s32.totalorder %s10, 0
    %p51 = por %p49, %p50
    %p52 = scmp.ne.s32.totalorder %s44, %s46
    %p53 = scmp.eq.s32.totalorder %s15, 1
    %p54 = por %p52, %p53
    %p55 = scmp.ne.s32.totalorder %s46, %s47
    %p56 = scmp.eq.s32.totalorder %s15, 0
    %p57 = por %p55, %p56
    %p58 = scmp.ne.s32.totalorder %s46, %s47
    %p59 = scmp.eq.s32.totalorder %s16, 1
    %p60 = por %p58, %p59
    %p62 = scmp.ne.s32.totalorder %s47, %s61
    %p63 = scmp.eq.s32.totalorder %s16, 0
    %p64 = por %p62, %p63
    %s66 = sadd.s32 %s65, 1
    %p69 = scmp.eq.s32.totalorder %s10, 1
    %p70 = scmp.ne.s32.totalorder %s65, %s67
    %p71 = scmp.eq.s32.totalorder %s10, 0
    %p72 = por %p70, %p71
    %p73 = scmp.ne.s32.totalorder %s65, %s67
    %p74 = scmp.eq.s32.totalorder %s15, 1
    %p75 = por %p73, %p74
    %p76 = scmp.ne.s32.totalorder %s67, %s68
    %p77 = scmp.eq.s32.totalorder %s15, 0
    %p78 = por %p76, %p77
    %p79 = scmp.ne.s32.totalorder %s67, %s68
    %p80 = scmp.eq.s32.totalorder %s16, 1
    %p81 = por %p79, %p80
    %p83 = scmp.ne.s32.totalorder %s68, %s82
    %p84 = scmp.eq.s32.totalorder %s16, 0
    %p85 = por %p83, %p84
    %s87 = sadd.s32 %s86, 1
    %p90 = scmp.eq.s32.totalorder %s10, 1
    %p91 = scmp.ne.s32.totalorder %s86, %s88
    %p92 = scmp.eq.s32.totalorder %s10, 0
    %p93 = por %p91, %p92
    %p94 = scmp.ne.s32.totalorder %s86, %s88
    %p95 = scmp.eq.s32.totalorder %s15, 1
    %p96 = por %p94, %p95
    %p97 = scmp.ne.s32.totalorder %s88, %s89
    %p98 = scmp.eq.s32.totalorder %s15, 0
    %p99 = por %p97, %p98
    %p100 = scmp.ne.s32.totalorder %s88, %s89
    %p101 = scmp.eq.s32.totalorder %s16, 1
    %p102 = por %p100, %p101
    %p104 = scmp.ne.s32.totalorder %s89, %s103
    %p105 = scmp.eq.s32.totalorder %s16, 0
    %p106 = por %p104, %p105
    %s107 = ssub.s32 %s10, %s17
    %p108 = scmp.eq.s32.totalorder %s107, 0
    %s110 = sadd.s32 %s109, 1
    %s111 = scalar_select %p108, %s109, %s110
    %p114 = pneg %p108
    %p115 = scmp.eq.s32.totalorder %s10, 1
    %p116 = por %p114, %p115
    %p117 = scmp.ne.s32.totalorder %s109, %s112
    %p118 = scmp.eq.s32.totalorder %s10, 0
    %p119 = por %p117, %p118
    %p120 = scmp.ne.s32.totalorder %s109, %s112
    %p121 = scmp.eq.s32.totalorder %s15, 1
    %p122 = por %p120, %p121
    %p123 = scmp.ne.s32.totalorder %s112, %s113
    %p124 = scmp.eq.s32.totalorder %s15, 0
    %p125 = por %p123, %p124
    %p126 = scmp.ne.s32.totalorder %s112, %s113
    %p127 = scmp.eq.s32.totalorder %s16, 1
    %p128 = por %p126, %p127
    %p130 = scmp.ne.s32.totalorder %s113, %s129
    %p131 = scmp.eq.s32.totalorder %s16, 0
    %p132 = por %p130, %p131
    %p133 = scmp.le.s32.totalorder 1, %s10
    %p134 = scmp.lt.s32.totalorder %s10, 3
    %p135 = pnand %p133, %p134
    %p136 = pneg %p135
    // Predicated region
    $region9: #{matmul_bn_act.1} parent=5 // pred_check
      _
    $region10: #{matmul_bn_act.1} parent=5 // pred_check_branch
      %138 = sbr.rel (%p135) target = $region12
    $region11: #{matmul_bn_act.1} parent=5 // pred_region
      %s139 = ssub.s32 %s10, 1
      // Predicated region
      $region13: #{matmul_bn_act.1} parent=11 // pred_check
        %p140 = pneg %p57
      $region14: #{matmul_bn_act.1} parent=11 // pred_check_branch
        %142 = sbr.rel (%p140) target = $region16
      $region15: #{matmul_bn_act.1} parent=11 // pred_region
        _
      $region16: #{matmul_bn_act.1} parent=11 // pred_fallthru
        _
      // Predicated region
      $region17: #{matmul_bn_act.1} parent=11 // pred_check
        %p143 = pneg %p78
      $region18: #{matmul_bn_act.1} parent=11 // pred_check_branch
        %145 = sbr.rel (%p143) target = $region20
      $region19: #{matmul_bn_act.1} parent=11 // pred_region
        _
      $region20: #{matmul_bn_act.1} parent=11 // pred_fallthru
        _
      // Predicated region
      $region21: #{matmul_bn_act.1} parent=11 // pred_check
        %p146 = pneg %p99
      $region22: #{matmul_bn_act.1} parent=11 // pred_check_branch
        %148 = sbr.rel (%p146) target = $region24
      $region23: #{matmul_bn_act.1} parent=11 // pred_region
        _
      $region24: #{matmul_bn_act.1} parent=11 // pred_fallthru
        _
    $region12: #{matmul_bn_act.1} parent=5 // pred_fallthru
      _
    %p149 = scmp.lt.s32.totalorder %s10, 2
    // Predicated region
    $region25: #{matmul_bn_act.1} parent=5 // pred_check
      %p150 = pneg %p149
    $region26: #{matmul_bn_act.1} parent=5 // pred_check_branch
      %152 = sbr.rel (%p150) target = $region28
    $region27: #{matmul_bn_act.1} parent=5 // pred_region
      // Predicated region
      $region29: #{matmul_bn_act.1} parent=27 // pred_check
        %p153 = pneg %p30
      $region30: #{matmul_bn_act.1} parent=27 // pred_check_branch
        %155 = sbr.rel (%p153) target = $region32
      $region31: #{matmul_bn_act.1} parent=27 // pred_region
        %s156 = smul.u32 32, %s10
        %p157 = scmp.lt.s32.totalorder %s156, 63
        %s158 = scalar_select %p157, %s156, 63
        %s159 = smul.addr %s158, 4
        %s160 = scalar_lea.vmem %s0, %s159
        %s161 = smul.u32 32, %s10
      $region32: #{matmul_bn_act.1} parent=27 // pred_fallthru
        _
    $region28: #{matmul_bn_act.1} parent=5 // pred_fallthru
      _
    %p162 = scmp.le.s32.totalorder 1, %s10
    %p163 = scmp.lt.s32.totalorder %s10, 3
    %p164 = pnand %p162, %p163
    %p165 = pneg %p164
    // Predicated region
    $region33: #{matmul_bn_act.1} parent=5 // pred_check
      _
    $region34: #{matmul_bn_act.1} parent=5 // pred_check_branch
      %167 = sbr.rel (%p164) target = $region36
    $region35: #{matmul_bn_act.1} parent=5 // pred_region
      %s168 = ssub.s32 %s10, 1
      %s169 = smul.u32 32, %s15
      %p170 = scmp.lt.s32.totalorder %s169, 63
      %s171 = scalar_select %p170, %s169, 63
      %s172 = smul.addr %s171, 4
      %s173 = scalar_lea.vmem %s0, %s172
      %p174 = pneg %p36
      %p175 = pneg %p33
      %p176 = pneg %p57
      %p177 = pneg %p54
      %p178 = pneg %p78
      %p179 = pneg %p75
      %p180 = pneg %p99
      %p181 = pneg %p96
      %p182 = pneg %p125
      %p183 = pneg %p122
      %s184 = smul.u32 32, %s15
      %p185 = scmp.lt.s32.totalorder %s184, 63
      %s186 = scalar_select %p185, %s184, 63
      %s187 = smul.addr %s186, 4
      %s188 = scalar_lea.vmem %s4, %s187
      %s189 = smul.u32 32, %s15
      %p190 = scmp.lt.s32.totalorder %s189, 63
      %s191 = scalar_select %p190, %s189, 63
      %s192 = smul.addr %s191, 4
      %s193 = scalar_lea.vmem %s0, %s192
      %s194 = smul.u32 32, %s15
      %s195 = smul.u32 32, %s15
      %p196 = scmp.lt.s32.totalorder %s195, 63
      %s197 = scalar_select %p196, %s195, 63
      %s198 = smul.addr %s197, 4
      %s199 = scalar_lea.vmem %s4, %s198
      %s200 = smul.u32 32, %s15
      %v202 = vld [vmem:[%s193] sm:$0xf]
      %v203 = vld [vmem:[%s193 + $0x4] sm:$0xf]
      %v204 = vld [vmem:[%s193 + $0x8] sm:$0xf]
      %v205 = vld [vmem:[%s193 + $0xc] sm:$0xf]
      %v206 = vld [vmem:[%s193 + $0x10] sm:$0xf]
      %v207 = vld [vmem:[%s193 + $0x14] sm:$0xf]
      %v208 = vld [vmem:[%s193 + $0x18] sm:$0xf]
      %v209 = vld [vmem:[%s193 + $0x1c] sm:$0xf]
      %v210 = vld [vmem:[%s193 + $0x20] sm:$0xf]
      %v211 = vld [vmem:[%s193 + $0x24] sm:$0xf]
      %v212 = vld [vmem:[%s193 + $0x28] sm:$0xf]
      %v213 = vld [vmem:[%s193 + $0x2c] sm:$0xf]
      %v214 = vld [vmem:[%s193 + $0x30] sm:$0xf]
      %v215 = vld [vmem:[%s193 + $0x34] sm:$0xf]
      %v216 = vld [vmem:[%s193 + $0x38] sm:$0xf]
      %v217 = vld [vmem:[%s193 + $0x3c] sm:$0xf]
      %v218 = vld [vmem:[%s193 + $0x40] sm:$0xf]
      %v219 = vld [vmem:[%s193 + $0x44] sm:$0xf]
      %v220 = vld [vmem:[%s193 + $0x48] sm:$0xf]
      %v221 = vld [vmem:[%s193 + $0x4c] sm:$0xf]
      %v222 = vld [vmem:[%s193 + $0x50] sm:$0xf]
      %v223 = vld [vmem:[%s193 + $0x54] sm:$0xf]
      %v224 = vld [vmem:[%s193 + $0x58] sm:$0xf]
      %v225 = vld [vmem:[%s193 + $0x5c] sm:$0xf]
      %v226 = vld [vmem:[%s193 + $0x60] sm:$0xf]
      %v227 = vld [vmem:[%s193 + $0x64] sm:$0xf]
      %v228 = vld [vmem:[%s193 + $0x68] sm:$0xf]
      %v229 = vld [vmem:[%s193 + $0x6c] sm:$0xf]
      %v230 = vld [vmem:[%s193 + $0x70] sm:$0xf]
      %v231 = vld [vmem:[%s193 + $0x74] sm:$0xf]
      %v232 = vld [vmem:[%s193 + $0x78] sm:$0xf]
      %v233 = vld [vmem:[%s193 + $0x7c] sm:$0xf]
      %v234 = vld [vmem:[%s1] sm:$0xf]
      %v235 = vld [vmem:[%s1 + $0x4] sm:$0xf]
      %v236 = vld [vmem:[%s1 + $0x8] sm:$0xf]
      %v237 = vld [vmem:[%s1 + $0xc] sm:$0x3]
      %v270 = vunpack.c.l.b16 %v202
      %v271 = vunpack.c.l.b16 %v203
      %v272 = vunpack.c.l.b16 %v204
      %v273 = vunpack.c.l.b16 %v205
      %v274 = vunpack.c.l.b16 %v206
      %v275 = vunpack.c.l.b16 %v207
      %v276 = vunpack.c.l.b16 %v208
      %v277 = vunpack.c.l.b16 %v209
      %v278 = vunpack.c.l.b16 %v210
      %v279 = vunpack.c.l.b16 %v211
      %v280 = vunpack.c.l.b16 %v212
      %v281 = vunpack.c.l.b16 %v213
      %v282 = vunpack.c.l.b16 %v214
      %v283 = vunpack.c.l.b16 %v215
      %v284 = vunpack.c.l.b16 %v216
      %v285 = vunpack.c.l.b16 %v217
      %v286 = vunpack.c.l.b16 %v218
      %v287 = vunpack.c.l.b16 %v219
      %v288 = vunpack.c.l.b16 %v220
      %v289 = vunpack.c.l.b16 %v221
      %v290 = vunpack.c.l.b16 %v222
      %v291 = vunpack.c.l.b16 %v223
      %v292 = vunpack.c.l.b16 %v224
      %v293 = vunpack.c.l.b16 %v225
      %v294 = vunpack.c.l.b16 %v226
      %v295 = vunpack.c.l.b16 %v227
      %v296 = vunpack.c.l.b16 %v228
      %v297 = vunpack.c.l.b16 %v229
      %v298 = vunpack.c.l.b16 %v230
      %v299 = vunpack.c.l.b16 %v231
      %v300 = vunpack.c.l.b16 %v232
      %v301 = vunpack.c.l.b16 %v233
      %v302 = vpack.c.b16 %v271, %v270
      %v303 = vpack.c.b16 %v273, %v272
      %v304 = vpack.c.b16 %v275, %v274
      %v305 = vpack.c.b16 %v277, %v276
      %v306 = vpack.c.b16 %v279, %v278
      %v307 = vpack.c.b16 %v281, %v280
      %v308 = vpack.c.b16 %v283, %v282
      %v309 = vpack.c.b16 %v285, %v284
      %v310 = vpack.c.b16 %v287, %v286
      %v311 = vpack.c.b16 %v289, %v288
      %v312 = vpack.c.b16 %v291, %v290
      %v313 = vpack.c.b16 %v293, %v292
      %v314 = vpack.c.b16 %v295, %v294
      %v315 = vpack.c.b16 %v297, %v296
      %v316 = vpack.c.b16 %v299, %v298
      %v317 = vpack.c.b16 %v301, %v300
      %v322 = vunpack.c.l.b16 %v234
      %v323 = vunpack.c.l.b16 %v235
      %v324 = vunpack.c.l.b16 %v236
      %v325 = vunpack.c.l.b16 %v237
      %v326 = vpack.c.b16 %v323, %v322
      %v327 = vpack.c.b16 %v325, %v324
      %vm329 = vcmask 220160
      %v331 = vsel %vm329, %v302, 0
      %v334 = vsel %vm329, %v303, 0
      %v337 = vsel %vm329, %v304, 0
      %v340 = vsel %vm329, %v305, 0
      %v343 = vsel %vm329, %v306, 0
      %v346 = vsel %vm329, %v307, 0
      %v349 = vsel %vm329, %v308, 0
      %v352 = vsel %vm329, %v309, 0
      %v355 = vsel %vm329, %v310, 0
      %v358 = vsel %vm329, %v311, 0
      %v361 = vsel %vm329, %v312, 0
      %v364 = vsel %vm329, %v313, 0
      %v367 = vsel %vm329, %v314, 0
      %v370 = vsel %vm329, %v315, 0
      %v373 = vsel %vm329, %v316, 0
      %v376 = vsel %vm329, %v317, 0
      %vm378 = vcmask 1044480
      %vm379 = vcmask 1045504
      %v380 = vsel %vm378, 4294967295, 65535
      %v381 = vsel %vm379, %v380, 0
      %v383 = vand.u32 %v327, %v381
      %385 = vmatpush.bf16.msra.mxu0 0
      %386 = vmatpush.bf16.msra.mxu0 0
      %387 = vmatpush.bf16.msra.mxu0 0
      %388 = vmatpush.bf16.msra.mxu0 0
      %389 = vmatpush.bf16.msra.mxu0 0
      %390 = vmatpush.bf16.msra.mxu0 0
      %391 = vmatpush.bf16.msra.mxu0 %v383
      %392 = vmatpush.bf16.msra.mxu0 %v326
      %393 = vmatmul.bf16.gmra.mxu0 %v331
      %v394 = vpop.f32.mrf.mxu0
      %v395 = vadd.f32 0.0, %v394
      %v396 = vpop.f32.mrf.mxu0
      %v397 = vadd.f32 0.0, %v396
      %398 = vmatmul.bf16.gmra.mxu0 %v334
      %v399 = vpop.f32.mrf.mxu0
      %v400 = vadd.f32 0.0, %v399
      %v401 = vpop.f32.mrf.mxu0
      %v402 = vadd.f32 0.0, %v401
      %403 = vmatmul.bf16.gmra.mxu0 %v337
      %v404 = vpop.f32.mrf.mxu0
      %v405 = vadd.f32 0.0, %v404
      %v406 = vpop.f32.mrf.mxu0
      %v407 = vadd.f32 0.0, %v406
      %408 = vmatmul.bf16.gmra.mxu0 %v340
      %v409 = vpop.f32.mrf.mxu0
      %v410 = vadd.f32 0.0, %v409
      %v411 = vpop.f32.mrf.mxu0
      %v412 = vadd.f32 0.0, %v411
      %413 = vmatmul.bf16.gmra.mxu0 %v343
      %v414 = vpop.f32.mrf.mxu0
      %v415 = vadd.f32 0.0, %v414
      %v416 = vpop.f32.mrf.mxu0
      %v417 = vadd.f32 0.0, %v416
      %418 = vmatmul.bf16.gmra.mxu0 %v346
      %v419 = vpop.f32.mrf.mxu0
      %v420 = vadd.f32 0.0, %v419
      %v421 = vpop.f32.mrf.mxu0
      %v422 = vadd.f32 0.0, %v421
      %423 = vmatmul.bf16.gmra.mxu0 %v349
      %v424 = vpop.f32.mrf.mxu0
      %v425 = vadd.f32 0.0, %v424
      %v426 = vpop.f32.mrf.mxu0
      %v427 = vadd.f32 0.0, %v426
      %428 = vmatmul.bf16.gmra.mxu0 %v352
      %v429 = vpop.f32.mrf.mxu0
      %v430 = vadd.f32 0.0, %v429
      %v431 = vpop.f32.mrf.mxu0
      %v432 = vadd.f32 0.0, %v431
      %433 = vmatmul.bf16.gmra.mxu0 %v355
      %v434 = vpop.f32.mrf.mxu0
      %v435 = vadd.f32 0.0, %v434
      %v436 = vpop.f32.mrf.mxu0
      %v437 = vadd.f32 0.0, %v436
      %438 = vmatmul.bf16.gmra.mxu0 %v358
      %v439 = vpop.f32.mrf.mxu0
      %v440 = vadd.f32 0.0, %v439
      %v441 = vpop.f32.mrf.mxu0
      %v442 = vadd.f32 0.0, %v441
      %443 = vmatmul.bf16.gmra.mxu0 %v361
      %v444 = vpop.f32.mrf.mxu0
      %v445 = vadd.f32 0.0, %v444
      %v446 = vpop.f32.mrf.mxu0
      %v447 = vadd.f32 0.0, %v446
      %448 = vmatmul.bf16.gmra.mxu0 %v364
      %v449 = vpop.f32.mrf.mxu0
      %v450 = vadd.f32 0.0, %v449
      %v451 = vpop.f32.mrf.mxu0
      %v452 = vadd.f32 0.0, %v451
      %453 = vmatmul.bf16.gmra.mxu0 %v367
      %v454 = vpop.f32.mrf.mxu0
      %v455 = vadd.f32 0.0, %v454
      %v456 = vpop.f32.mrf.mxu0
      %v457 = vadd.f32 0.0, %v456
      %458 = vmatmul.bf16.gmra.mxu0 %v370
      %v459 = vpop.f32.mrf.mxu0
      %v460 = vadd.f32 0.0, %v459
      %v461 = vpop.f32.mrf.mxu0
      %v462 = vadd.f32 0.0, %v461
      %463 = vmatmul.bf16.gmra.mxu0 %v373
      %v464 = vpop.f32.mrf.mxu0
      %v465 = vadd.f32 0.0, %v464
      %v466 = vpop.f32.mrf.mxu0
      %v467 = vadd.f32 0.0, %v466
      %468 = vmatmul.bf16.gmra.mxu0 %v376
      %v469 = vpop.f32.mrf.mxu0
      %v470 = vadd.f32 0.0, %v469
      %v471 = vpop.f32.mrf.mxu0
      %v472 = vadd.f32 0.0, %v471
      %473 = vdwg.mxu0
      %v474 = vld [vmem:[%s2] sm:$0x1]
      %v476 = vperm.slane %v474, 0
      %v478 = vmul.f32 %v395, %v476
      %v479 = vmul.f32 %v397, %v476
      %v480 = vmul.f32 %v400, %v476
      %v481 = vmul.f32 %v402, %v476
      %v482 = vmul.f32 %v405, %v476
      %v483 = vmul.f32 %v407, %v476
      %v484 = vmul.f32 %v410, %v476
      %v485 = vmul.f32 %v412, %v476
      %v486 = vmul.f32 %v415, %v476
      %v487 = vmul.f32 %v417, %v476
      %v488 = vmul.f32 %v420, %v476
      %v489 = vmul.f32 %v422, %v476
      %v490 = vmul.f32 %v425, %v476
      %v491 = vmul.f32 %v427, %v476
      %v492 = vmul.f32 %v430, %v476
      %v493 = vmul.f32 %v432, %v476
      %v494 = vmul.f32 %v435, %v476
      %v495 = vmul.f32 %v437, %v476
      %v496 = vmul.f32 %v440, %v476
      %v497 = vmul.f32 %v442, %v476
      %v498 = vmul.f32 %v445, %v476
      %v499 = vmul.f32 %v447, %v476
      %v500 = vmul.f32 %v450, %v476
      %v501 = vmul.f32 %v452, %v476
      %v502 = vmul.f32 %v455, %v476
      %v503 = vmul.f32 %v457, %v476
      %v504 = vmul.f32 %v460, %v476
      %v505 = vmul.f32 %v462, %v476
      %v506 = vmul.f32 %v465, %v476
      %v507 = vmul.f32 %v467, %v476
      %v508 = vmul.f32 %v470, %v476
      %v509 = vmul.f32 %v472, %v476
      %v510 = vld [vmem:[%s3] sm:$0x1]
      %v512 = vperm.slane %v510, 0
      %v514 = vadd.f32 %v478, %v512
      %v515 = vadd.f32 %v479, %v512
      %v516 = vadd.f32 %v480, %v512
      %v517 = vadd.f32 %v481, %v512
      %v518 = vadd.f32 %v482, %v512
      %v519 = vadd.f32 %v483, %v512
      %v520 = vadd.f32 %v484, %v512
      %v521 = vadd.f32 %v485, %v512
      %v522 = vadd.f32 %v486, %v512
      %v523 = vadd.f32 %v487, %v512
      %v524 = vadd.f32 %v488, %v512
      %v525 = vadd.f32 %v489, %v512
      %v526 = vadd.f32 %v490, %v512
      %v527 = vadd.f32 %v491, %v512
      %v528 = vadd.f32 %v492, %v512
      %v529 = vadd.f32 %v493, %v512
      %v530 = vadd.f32 %v494, %v512
      %v531 = vadd.f32 %v495, %v512
      %v532 = vadd.f32 %v496, %v512
      %v533 = vadd.f32 %v497, %v512
      %v534 = vadd.f32 %v498, %v512
      %v535 = vadd.f32 %v499, %v512
      %v536 = vadd.f32 %v500, %v512
      %v537 = vadd.f32 %v501, %v512
      %v538 = vadd.f32 %v502, %v512
      %v539 = vadd.f32 %v503, %v512
      %v540 = vadd.f32 %v504, %v512
      %v541 = vadd.f32 %v505, %v512
      %v542 = vadd.f32 %v506, %v512
      %v543 = vadd.f32 %v507, %v512
      %v544 = vadd.f32 %v508, %v512
      %v545 = vadd.f32 %v509, %v512
      %v546 = vmax.f32 %v514, 0.0
      %v547 = vmax.f32 %v515, 0.0
      %v548 = vmax.f32 %v516, 0.0
      %v549 = vmax.f32 %v517, 0.0
      %v550 = vmax.f32 %v518, 0.0
      %v551 = vmax.f32 %v519, 0.0
      %v552 = vmax.f32 %v520, 0.0
      %v553 = vmax.f32 %v521, 0.0
      %v554 = vmax.f32 %v522, 0.0
      %v555 = vmax.f32 %v523, 0.0
      %v556 = vmax.f32 %v524, 0.0
      %v557 = vmax.f32 %v525, 0.0
      %v558 = vmax.f32 %v526, 0.0
      %v559 = vmax.f32 %v527, 0.0
      %v560 = vmax.f32 %v528, 0.0
      %v561 = vmax.f32 %v529, 0.0
      %v562 = vmax.f32 %v530, 0.0
      %v563 = vmax.f32 %v531, 0.0
      %v564 = vmax.f32 %v532, 0.0
      %v565 = vmax.f32 %v533, 0.0
      %v566 = vmax.f32 %v534, 0.0
      %v567 = vmax.f32 %v535, 0.0
      %v568 = vmax.f32 %v536, 0.0
      %v569 = vmax.f32 %v537, 0.0
      %v570 = vmax.f32 %v538, 0.0
      %v571 = vmax.f32 %v539, 0.0
      %v572 = vmax.f32 %v540, 0.0
      %v573 = vmax.f32 %v541, 0.0
      %v574 = vmax.f32 %v542, 0.0
      %v575 = vmax.f32 %v543, 0.0
      %v576 = vmax.f32 %v544, 0.0
      %v577 = vmax.f32 %v545, 0.0
      %v578 = vmin.f32 %v546, 6.0
      %v579 = vmin.f32 %v547, 6.0
      %v580 = vmin.f32 %v548, 6.0
      %v581 = vmin.f32 %v549, 6.0
      %v582 = vmin.f32 %v550, 6.0
      %v583 = vmin.f32 %v551, 6.0
      %v584 = vmin.f32 %v552, 6.0
      %v585 = vmin.f32 %v553, 6.0
      %v586 = vmin.f32 %v554, 6.0
      %v587 = vmin.f32 %v555, 6.0
      %v588 = vmin.f32 %v556, 6.0
      %v589 = vmin.f32 %v557, 6.0
      %v590 = vmin.f32 %v558, 6.0
      %v591 = vmin.f32 %v559, 6.0
      %v592 = vmin.f32 %v560, 6.0
      %v593 = vmin.f32 %v561, 6.0
      %v594 = vmin.f32 %v562, 6.0
      %v595 = vmin.f32 %v563, 6.0
      %v596 = vmin.f32 %v564, 6.0
      %v597 = vmin.f32 %v565, 6.0
      %v598 = vmin.f32 %v566, 6.0
      %v599 = vmin.f32 %v567, 6.0
      %v600 = vmin.f32 %v568, 6.0
      %v601 = vmin.f32 %v569, 6.0
      %v602 = vmin.f32 %v570, 6.0
      %v603 = vmin.f32 %v571, 6.0
      %v604 = vmin.f32 %v572, 6.0
      %v605 = vmin.f32 %v573, 6.0
      %v606 = vmin.f32 %v574, 6.0
      %v607 = vmin.f32 %v575, 6.0
      %v608 = vmin.f32 %v576, 6.0
      %v609 = vmin.f32 %v577, 6.0
      %v610 = vpack.c.bf16 %v578, %v578
      %v611 = vpack.c.bf16 %v579, %v579
      %v612 = vpack.c.bf16 %v580, %v580
      %v613 = vpack.c.bf16 %v581, %v581
      %v614 = vpack.c.bf16 %v582, %v582
      %v615 = vpack.c.bf16 %v583, %v583
      %v616 = vpack.c.bf16 %v584, %v584
      %v617 = vpack.c.bf16 %v585, %v585
      %v618 = vpack.c.bf16 %v586, %v586
      %v619 = vpack.c.bf16 %v587, %v587
      %v620 = vpack.c.bf16 %v588, %v588
      %v621 = vpack.c.bf16 %v589, %v589
      %v622 = vpack.c.bf16 %v590, %v590
      %v623 = vpack.c.bf16 %v591, %v591
      %v624 = vpack.c.bf16 %v592, %v592
      %v625 = vpack.c.bf16 %v593, %v593
      %v626 = vpack.c.bf16 %v594, %v594
      %v627 = vpack.c.bf16 %v595, %v595
      %v628 = vpack.c.bf16 %v596, %v596
      %v629 = vpack.c.bf16 %v597, %v597
      %v630 = vpack.c.bf16 %v598, %v598
      %v631 = vpack.c.bf16 %v599, %v599
      %v632 = vpack.c.bf16 %v600, %v600
      %v633 = vpack.c.bf16 %v601, %v601
      %v634 = vpack.c.bf16 %v602, %v602
      %v635 = vpack.c.bf16 %v603, %v603
      %v636 = vpack.c.bf16 %v604, %v604
      %v637 = vpack.c.bf16 %v605, %v605
      %v638 = vpack.c.bf16 %v606, %v606
      %v639 = vpack.c.bf16 %v607, %v607
      %v640 = vpack.c.bf16 %v608, %v608
      %v641 = vpack.c.bf16 %v609, %v609
      %vm642 = vcmask 257024
      %643 = vst.msk [vmem:[%s199] sm:$0xf] %vm642, %v610
      %644 = vst.msk [vmem:[%s199 + $0x4] sm:$0xf] %vm642, %v611
      %645 = vst.msk [vmem:[%s199 + $0x8] sm:$0xf] %vm642, %v612
      %646 = vst.msk [vmem:[%s199 + $0xc] sm:$0xf] %vm642, %v613
      %647 = vst.msk [vmem:[%s199 + $0x10] sm:$0xf] %vm642, %v614
      %648 = vst.msk [vmem:[%s199 + $0x14] sm:$0xf] %vm642, %v615
      %649 = vst.msk [vmem:[%s199 + $0x18] sm:$0xf] %vm642, %v616
      %650 = vst.msk [vmem:[%s199 + $0x1c] sm:$0xf] %vm642, %v617
      %651 = vst.msk [vmem:[%s199 + $0x20] sm:$0xf] %vm642, %v618
      %652 = vst.msk [vmem:[%s199 + $0x24] sm:$0xf] %vm642, %v619
      %653 = vst.msk [vmem:[%s199 + $0x28] sm:$0xf] %vm642, %v620
      %654 = vst.msk [vmem:[%s199 + $0x2c] sm:$0xf] %vm642, %v621
      %655 = vst.msk [vmem:[%s199 + $0x30] sm:$0xf] %vm642, %v622
      %656 = vst.msk [vmem:[%s199 + $0x34] sm:$0xf] %vm642, %v623
      %657 = vst.msk [vmem:[%s199 + $0x38] sm:$0xf] %vm642, %v624
      %658 = vst.msk [vmem:[%s199 + $0x3c] sm:$0xf] %vm642, %v625
      %659 = vst.msk [vmem:[%s199 + $0x40] sm:$0xf] %vm642, %v626
      %660 = vst.msk [vmem:[%s199 + $0x44] sm:$0xf] %vm642, %v627
      %661 = vst.msk [vmem:[%s199 + $0x48] sm:$0xf] %vm642, %v628
      %662 = vst.msk [vmem:[%s199 + $0x4c] sm:$0xf] %vm642, %v629
      %663 = vst.msk [vmem:[%s199 + $0x50] sm:$0xf] %vm642, %v630
      %664 = vst.msk [vmem:[%s199 + $0x54] sm:$0xf] %vm642, %v631
      %665 = vst.msk [vmem:[%s199 + $0x58] sm:$0xf] %vm642, %v632
      %666 = vst.msk [vmem:[%s199 + $0x5c] sm:$0xf] %vm642, %v633
      %667 = vst.msk [vmem:[%s199 + $0x60] sm:$0xf] %vm642, %v634
      %668 = vst.msk [vmem:[%s199 + $0x64] sm:$0xf] %vm642, %v635
      %669 = vst.msk [vmem:[%s199 + $0x68] sm:$0xf] %vm642, %v636
      %670 = vst.msk [vmem:[%s199 + $0x6c] sm:$0xf] %vm642, %v637
      %671 = vst.msk [vmem:[%s199 + $0x70] sm:$0xf] %vm642, %v638
      %672 = vst.msk [vmem:[%s199 + $0x74] sm:$0xf] %vm642, %v639
      %673 = vst.msk [vmem:[%s199 + $0x78] sm:$0xf] %vm642, %v640
      %674 = vst.msk [vmem:[%s199 + $0x7c] sm:$0xf] %vm642, %v641
      %s675 = smul.u32 32, %s15
      %p676 = scmp.lt.s32.totalorder %s675, 63
      %s677 = scalar_select %p676, %s675, 63
      %s678 = smul.addr %s677, 4
      %s679 = scalar_lea.vmem %s4, %s678
      // Predicated region
      $region37: #{matmul_bn_act.1} parent=35 // pred_check
        %p680 = pneg %p122
      $region38: #{matmul_bn_act.1} parent=35 // pred_check_branch
        %682 = sbr.rel (%p680) target = $region40
      $region39: #{matmul_bn_act.1} parent=35 // pred_region
        %s683 = smul.u32 32, %s15
      $region40: #{matmul_bn_act.1} parent=35 // pred_fallthru
        _
    $region36: #{matmul_bn_act.1} parent=5 // pred_fallthru
      _
    %p684 = scmp.le.s32.totalorder 2, %s10
    // Predicated region
    $region41: #{matmul_bn_act.1} parent=5 // pred_check
      %p685 = pneg %p684
    $region42: #{matmul_bn_act.1} parent=5 // pred_check_branch
      %687 = sbr.rel (%p685) target = $region44
    $region43: #{matmul_bn_act.1} parent=5 // pred_region
      %s688 = ssub.s32 %s10, 2
      // Predicated region
      $region45: #{matmul_bn_act.1} parent=43 // pred_check
        %p689 = pneg %p128
      $region46: #{matmul_bn_act.1} parent=43 // pred_check_branch
        %691 = sbr.rel (%p689) target = $region48
      $region47: #{matmul_bn_act.1} parent=43 // pred_region
        %s692 = smul.u32 32, %s16
        %p693 = scmp.lt.s32.totalorder %s692, 63
        %s694 = scalar_select %p693, %s692, 63
        %s695 = smul.addr %s694, 4
        %s696 = scalar_lea.vmem %s4, %s695
      $region48: #{matmul_bn_act.1} parent=43 // pred_fallthru
        _
    $region44: #{matmul_bn_act.1} parent=5 // pred_fallthru
      _
  $region6: #{matmul_bn_act.1} parent=0 // loop_footer
    %s14 = sadd.s32 1, %s10
  $region7: #{matmul_bn_act.1} parent=0 // loop_footer_branch
    %9 = sbr.rel target = $region3
  $region8: #{matmul_bn_act.1} parent=0 // loop_exit
    _

</llo_original>
